<compile_context>
chip_gen: v6e
topology: v6e:2x2x1
jax: 0.10.0
libtpu: 0.0.40
codegen_flags: <defaults>
</compile_context>

<pallas_src>
import jax
import jax.numpy as jnp
from jax.experimental import pallas as pl
from jax.experimental.pallas import tpu as pltpu


def _round_up(x, m):
    return ((x + m - 1) // m) * m


def mlp_kernel(x_ref, w1_ref, b1_ref, w2_ref, b2_ref, w3_ref, b3_ref, o_ref):
    # Fused MLP tile: 3 MXU matmuls (bf16 operands, f32 accumulation).
    # Bias adds + ReLUs act on the f32 accumulator (clean VPU path on v5e).
    x = x_ref[...]                                            # (TB, D_in) bf16
    h1 = jnp.dot(x, w1_ref[...], preferred_element_type=jnp.float32)
    h1 = jnp.maximum(h1 + b1_ref[...], 0.0)
    h2 = jnp.dot(h1.astype(w2_ref.dtype), w2_ref[...],
                 preferred_element_type=jnp.float32)
    h2 = jnp.maximum(h2 + b2_ref[...], 0.0)
    out = jnp.dot(h2.astype(w3_ref.dtype), w3_ref[...],
                  preferred_element_type=jnp.float32)
    o_ref[...] = (out + b3_ref[...]).astype(o_ref.dtype)


def neural_net_forward(x, params, *, block_batch=512):
    """x: (batch, input_size) float32; params: dict of w1,b1,w2,b2,w3,b3.

    Weights are stored as (in_features, out_features), biases as (1, out).
    """
    w1, b1 = params["w1"], params["b1"]
    w2, b2 = params["w2"], params["b2"]
    w3, b3 = params["w3"], params["b3"]
    batch, input_size = x.shape
    hidden = w1.shape[1]
    num_classes = w3.shape[1]

    # Lane-dense output: pad classes up to a multiple of 128 so stores are
    # full-width vst (padded columns get zero weight/bias and are sliced off).
    ncp = _round_up(num_classes, 128)

    # Batch tiling: TB rows per grid step (sublane-aligned to 8).
    tb = min(block_batch, _round_up(batch, 8))
    batch_p = _round_up(batch, tb)
    nb = batch_p // tb

    # bf16 activations / weights; biases stay f32 (added on f32 accumulator).
    xb = jnp.zeros((batch_p, input_size), jnp.bfloat16).at[:batch].set(
        x.astype(jnp.bfloat16))
    w1b = w1.astype(jnp.bfloat16)
    w2b = w2.astype(jnp.bfloat16)
    w3b = jnp.zeros((hidden, ncp), jnp.bfloat16).at[:, :num_classes].set(
        w3.astype(jnp.bfloat16))
    b3p = jnp.zeros((1, ncp), jnp.float32).at[:, :num_classes].set(b3)

    # Weights / biases: constant index_map -> fetched once, VMEM-resident.
    def const(shape):
        return pl.BlockSpec(shape, lambda i: tuple(0 for _ in shape))

    flops = 2 * batch_p * (input_size * hidden + hidden * hidden + hidden * ncp)
    bytes_accessed = (
        xb.size * 2 + w1b.size * 2 + w2b.size * 2 + w3b.size * 2
        + b1.size * 4 + b2.size * 4 + b3p.size * 4
        + batch_p * ncp * 4)

    out_p = pl.pallas_call(
        mlp_kernel,
        out_shape=jax.ShapeDtypeStruct((batch_p, ncp), jnp.float32),
        grid=(nb,),
        in_specs=[
            pl.BlockSpec((tb, input_size), lambda i: (i, 0)),   # x: batch-tiled
            const(w1b.shape), const(b1.shape),
            const(w2b.shape), const(b2.shape),
            const(w3b.shape), const(b3p.shape),
        ],
        out_specs=pl.BlockSpec((tb, ncp), lambda i: (i, 0)),
        compiler_params=pltpu.CompilerParams(
            dimension_semantics=("parallel",)),   # megacore on v7x
        cost_estimate=pl.CostEstimate(
            flops=flops, transcendentals=0, bytes_accessed=bytes_accessed),
    )(xb, w1b, b1, w2b, b2, w3b, b3p)

    return out_p[:batch, :num_classes]


def init_params(key, input_size, hidden_size, num_classes):
    """Deterministic init mimicking nn.Linear's uniform(-1/sqrt(fan_in), +)."""
    ks = jax.random.split(key, 6)

    def linear(kw, kb, fan_in, fan_out):
        bound = 1.0 / jnp.sqrt(fan_in)
        w = jax.random.uniform(kw, (fan_in, fan_out), jnp.float32, -bound, bound)
        b = jax.random.uniform(kb, (1, fan_out), jnp.float32, -bound, bound)
        return w, b

    w1, b1 = linear(ks[0], ks[1], input_size, hidden_size)
    w2, b2 = linear(ks[2], ks[3], hidden_size, hidden_size)
    w3, b3 = linear(ks[4], ks[5], hidden_size, num_classes)
    return {"w1": w1, "b1": b1, "w2": w2, "b2": b2, "w3": w3, "b3": b3}


def reference_forward(x, p):
    # Same bf16-operand / f32-accumulate dataflow as the kernel.
    xb = x.astype(jnp.bfloat16)
    h1 = jnp.maximum(
        jnp.dot(xb, p["w1"].astype(jnp.bfloat16),
                preferred_element_type=jnp.float32) + p["b1"], 0.0)
    h2 = jnp.maximum(
        jnp.dot(h1.astype(jnp.bfloat16), p["w2"].astype(jnp.bfloat16),
                preferred_element_type=jnp.float32) + p["b2"], 0.0)
    return jnp.dot(h2.astype(jnp.bfloat16), p["w3"].astype(jnp.bfloat16),
                   preferred_element_type=jnp.float32) + p["b3"]


if __name__ == "__main__":
    # Small but grid-exercising shapes: 2 batch tiles of 128 rows each.
    batch, input_size, hidden_size, num_classes = 256, 32, 32, 16

    key = jax.random.PRNGKey(0)
    kx, kp = jax.random.split(key)
    x = jax.random.normal(kx, (batch, input_size), jnp.float32)
    params = init_params(kp, input_size, hidden_size, num_classes)

    out = neural_net_forward(x, params, block_batch=128)
    out = jax.block_until_ready(out)

    ref = reference_forward(x, params)
    assert out.shape == (batch, num_classes)
    assert jnp.allclose(out, ref, atol=1e-2, rtol=1e-2)

    print("KERNEL_OK")
</pallas_src>

<mosaic_0001>
module attributes {stable_mosaic.version = 11 : i64} {
  func.func @mlp_kernel(%arg0: i32, %arg1: memref<128x32xbf16, #tpu.memory_space<vmem>>, %arg2: memref<32x32xbf16, #tpu.memory_space<vmem>>, %arg3: memref<1x32xf32, #tpu.memory_space<vmem>>, %arg4: memref<32x32xbf16, #tpu.memory_space<vmem>>, %arg5: memref<1x32xf32, #tpu.memory_space<vmem>>, %arg6: memref<32x128xbf16, #tpu.memory_space<vmem>>, %arg7: memref<1x128xf32, #tpu.memory_space<vmem>>, %arg8: memref<128x128xf32, #tpu.memory_space<vmem>>) attributes {dimension_semantics = [#tpu.dimension_semantics<parallel>], iteration_bounds = array<i64: 2>, scalar_prefetch = 0 : i64, scratch_operands = 0 : i64, tpu.core_type = #tpu.core_type<tc>, window_params = [{transform_indices = @transform_0, window_bounds = array<i64: 128, 32>}, {pipeline_mode = #tpu.pipeline_mode<synchronous>, transform_indices = @transform_1, window_bounds = array<i64: 32, 32>}, {pipeline_mode = #tpu.pipeline_mode<synchronous>, transform_indices = @transform_2, window_bounds = array<i64: 1, 32>}, {pipeline_mode = #tpu.pipeline_mode<synchronous>, transform_indices = @transform_3, window_bounds = array<i64: 32, 32>}, {pipeline_mode = #tpu.pipeline_mode<synchronous>, transform_indices = @transform_4, window_bounds = array<i64: 1, 32>}, {pipeline_mode = #tpu.pipeline_mode<synchronous>, transform_indices = @transform_5, window_bounds = array<i64: 32, 128>}, {pipeline_mode = #tpu.pipeline_mode<synchronous>, transform_indices = @transform_6, window_bounds = array<i64: 1, 128>}, {transform_indices = @transform_7, window_bounds = array<i64: 128, 128>}]} {
    %c0 = arith.constant 0 : index
    %c0_0 = arith.constant 0 : index
    %0 = vector.load %arg1[%c0, %c0_0] : memref<128x32xbf16, #tpu.memory_space<vmem>>, vector<128x32xbf16>
    %c0_1 = arith.constant 0 : index
    %c0_2 = arith.constant 0 : index
    %1 = vector.load %arg2[%c0_1, %c0_2] : memref<32x32xbf16, #tpu.memory_space<vmem>>, vector<32x32xbf16>
    %cst = arith.constant dense<0.000000e+00> : vector<128x32xf32>
    %2 = tpu.matmul %0, %1, %cst {dimension_numbers = #tpu.dot_dimension_numbers<[1], [0], [0], [1], [0, 0, 1, 1], [], []>} : vector<128x32xbf16>, vector<32x32xbf16>, vector<128x32xf32> -> vector<128x32xf32>
    %c0_3 = arith.constant 0 : index
    %c0_4 = arith.constant 0 : index
    %3 = vector.load %arg3[%c0_3, %c0_4] : memref<1x32xf32, #tpu.memory_space<vmem>>, vector<1x32xf32>
    %4 = vector.broadcast %3 : vector<1x32xf32> to vector<128x32xf32>
    %5 = arith.addf %2, %4 : vector<128x32xf32>
    %cst_5 = arith.constant 0.000000e+00 : f32
    %6 = vector.broadcast %cst_5 : f32 to vector<128x32xf32>
    %7 = arith.maximumf %5, %6 : vector<128x32xf32>
    %8 = arith.truncf %7 : vector<128x32xf32> to vector<128x32xbf16>
    %c0_6 = arith.constant 0 : index
    %c0_7 = arith.constant 0 : index
    %9 = vector.load %arg4[%c0_6, %c0_7] : memref<32x32xbf16, #tpu.memory_space<vmem>>, vector<32x32xbf16>
    %cst_8 = arith.constant dense<0.000000e+00> : vector<128x32xf32>
    %10 = tpu.matmul %8, %9, %cst_8 {dimension_numbers = #tpu.dot_dimension_numbers<[1], [0], [0], [1], [0, 0, 1, 1], [], []>} : vector<128x32xbf16>, vector<32x32xbf16>, vector<128x32xf32> -> vector<128x32xf32>
    %c0_9 = arith.constant 0 : index
    %c0_10 = arith.constant 0 : index
    %11 = vector.load %arg5[%c0_9, %c0_10] : memref<1x32xf32, #tpu.memory_space<vmem>>, vector<1x32xf32>
    %12 = vector.broadcast %11 : vector<1x32xf32> to vector<128x32xf32>
    %13 = arith.addf %10, %12 : vector<128x32xf32>
    %cst_11 = arith.constant 0.000000e+00 : f32
    %14 = vector.broadcast %cst_11 : f32 to vector<128x32xf32>
    %15 = arith.maximumf %13, %14 : vector<128x32xf32>
    %16 = arith.truncf %15 : vector<128x32xf32> to vector<128x32xbf16>
    %c0_12 = arith.constant 0 : index
    %c0_13 = arith.constant 0 : index
    %17 = vector.load %arg6[%c0_12, %c0_13] : memref<32x128xbf16, #tpu.memory_space<vmem>>, vector<32x128xbf16>
    %cst_14 = arith.constant dense<0.000000e+00> : vector<128x128xf32>
    %18 = tpu.matmul %16, %17, %cst_14 {dimension_numbers = #tpu.dot_dimension_numbers<[1], [0], [0], [1], [0, 0, 1, 1], [], []>} : vector<128x32xbf16>, vector<32x128xbf16>, vector<128x128xf32> -> vector<128x128xf32>
    %c0_15 = arith.constant 0 : index
    %c0_16 = arith.constant 0 : index
    %19 = vector.load %arg7[%c0_15, %c0_16] : memref<1x128xf32, #tpu.memory_space<vmem>>, vector<1x128xf32>
    %20 = vector.broadcast %19 : vector<1x128xf32> to vector<128x128xf32>
    %21 = arith.addf %18, %20 : vector<128x128xf32>
    %c0_17 = arith.constant 0 : index
    %c0_18 = arith.constant 0 : index
    %22 = vector.load %arg8[%c0_17, %c0_18] : memref<128x128xf32, #tpu.memory_space<vmem>>, vector<128x128xf32>
    tpu.vector_store %arg8[%c0_17, %c0_18], %21 {strides = array<i32>} : memref<128x128xf32, #tpu.memory_space<vmem>>, vector<128x128xf32>,
    return
  }
  func.func @transform_0(%arg0: i32) -> (i32, i32) {
    %c0_i32 = arith.constant 0 : i32
    %c0_i32_0 = arith.constant 0 : i32
    return %arg0, %c0_i32 : i32, i32
  }
  func.func @transform_1(%arg0: i32) -> (i32, i32) {
    %c0_i32 = arith.constant 0 : i32
    %c0_i32_0 = arith.constant 0 : i32
    %c0_i32_1 = arith.constant 0 : i32
    return %c0_i32, %c0_i32_0 : i32, i32
  }
  func.func @transform_2(%arg0: i32) -> (i32, i32) {
    %c0_i32 = arith.constant 0 : i32
    %c0_i32_0 = arith.constant 0 : i32
    %c0_i32_1 = arith.constant 0 : i32
    return %c0_i32, %c0_i32_0 : i32, i32
  }
  func.func @transform_3(%arg0: i32) -> (i32, i32) {
    %c0_i32 = arith.constant 0 : i32
    %c0_i32_0 = arith.constant 0 : i32
    %c0_i32_1 = arith.constant 0 : i32
    return %c0_i32, %c0_i32_0 : i32, i32
  }
  func.func @transform_4(%arg0: i32) -> (i32, i32) {
    %c0_i32 = arith.constant 0 : i32
    %c0_i32_0 = arith.constant 0 : i32
    %c0_i32_1 = arith.constant 0 : i32
    return %c0_i32, %c0_i32_0 : i32, i32
  }
  func.func @transform_5(%arg0: i32) -> (i32, i32) {
    %c0_i32 = arith.constant 0 : i32
    %c0_i32_0 = arith.constant 0 : i32
    %c0_i32_1 = arith.constant 0 : i32
    return %c0_i32, %c0_i32_0 : i32, i32
  }
  func.func @transform_6(%arg0: i32) -> (i32, i32) {
    %c0_i32 = arith.constant 0 : i32
    %c0_i32_0 = arith.constant 0 : i32
    %c0_i32_1 = arith.constant 0 : i32
    return %c0_i32, %c0_i32_0 : i32, i32
  }
  func.func @transform_7(%arg0: i32) -> (i32, i32) {
    %c0_i32 = arith.constant 0 : i32
    %c0_i32_0 = arith.constant 0 : i32
    return %arg0, %c0_i32 : i32, i32
  }
}

</mosaic_0001>

<llo_original>
// kernel: tpu_custom_call.1
$region0: #{tpu_custom_call.1}
  #allocation0 [shape = 'u32[]', space=smem, size = 0x4, offset = 0x4, fixed_abs, tag = 'smem constant byte address 0x4 - core index']
  #allocation1 [shape = 'u32[144,128]{1,0:T(1,128)}', space=vmem, size = 0x12000, scoped, tag = 'internal scratch']
  %s0 = inlined_call_operand.vmem [shape: bf16[256,32], index: 0, kind: input, shape index: {}]
  %s1 = inlined_call_operand.vmem [shape: bf16[32,32], index: 1, kind: input, shape index: {}]
  %s2 = inlined_call_operand.vmem [shape: f32[1,32], index: 2, kind: input, shape index: {}]
  %s3 = inlined_call_operand.vmem [shape: bf16[32,32], index: 3, kind: input, shape index: {}]
  %s4 = inlined_call_operand.vmem [shape: f32[1,32], index: 4, kind: input, shape index: {}]
  %s5 = inlined_call_operand.vmem [shape: bf16[32,128], index: 5, kind: input, shape index: {}]
  %s6 = inlined_call_operand.vmem [shape: f32[1,128], index: 6, kind: input, shape index: {}]
  %s7 = inlined_call_operand.hbm [shape: f32[256,128], index: 7, kind: output, shape index: {}]
  %s8 = sld [smem:[#allocation0]]
  $region61: #{tpu_custom_call.1} parent=0
    _
  %s10 = ssub.s32 1, %s8
  %s11 = scalar_select 0, %s10, %s8
  $region1: #{tpu_custom_call.1} parent=0
    #allocation2 [shape = 'u8[131072]{0}', space=vmem, size = 0x20000, scoped, tag = 'output window, operand 0']
    #allocation3 [shape = 's32[2]{0}', space=sflag, size = 0x8, scoped, tag = 'scoped memory for tpu_custom_call.1']
    %12 = vsyncpa [#allocation3], 0
    %s13 = scalar_lea.sflag [#allocation3], 1
    %14 = vsyncpa %s13, 0
    loop: start=0, step=1, limit=4
    $region2: #{tpu_custom_call.1} parent=1 // loop_pre_header
      _
    $region3: #{tpu_custom_call.1} parent=1 // loop_header
      %s16 = sphi 0, %s20
      %p17 = scmp.ge.s32.totalorder %s16, 4
      %s26 = sphi 0, %s28
      %s29 = sphi 0, %s26
      %s30 = sphi 0, %s29
      %s46 = sphi 0, %s30
      %s50 = sphi 0, %s50
      %s52 = sphi 0, %s50
      %s53 = sphi 0, %s52
      %s67 = sphi 0, %s53
      %s71 = sphi 0, %s71
      %s73 = sphi 0, %s71
      %s74 = sphi 0, %s73
      %s88 = sphi 0, %s74
      %s92 = sphi 0, %s92
      %s94 = sphi 0, %s92
      %s95 = sphi 0, %s94
      %s109 = sphi 0, %s95
      %s113 = sphi 0, %s113
      %s115 = sphi 0, %s113
      %s116 = sphi 0, %s115
      %s130 = sphi 0, %s116
      %s134 = sphi 0, %s134
      %s136 = sphi 0, %s134
      %s137 = sphi 0, %s136
      %s151 = sphi 0, %s137
      %s155 = sphi 0, %s155
      %s157 = sphi 0, %s155
      %s158 = sphi 0, %s157
      %s172 = sphi 0, %s158
      %s178 = sphi 0, %s180
      %s181 = sphi 0, %s178
      %s182 = sphi 0, %s181
      %s198 = sphi 0, %s182
    $region4: #{tpu_custom_call.1} parent=1 // loop_header_branch
      %19 = sbr.rel (%p17) target = $region8
    $region5: #{tpu_custom_call.1} parent=1 // loop_body
      %s21 = ssub.s32 %s16, 1
      %s22 = ssub.s32 %s16, 2
      %s23 = sadd.s32 %s16, 1
      %s24 = ssub.s32 %s16, %s23
      %p25 = scmp.eq.s32.totalorder %s24, 0
      %s27 = sadd.s32 %s26, 1
      %s28 = scalar_select %p25, %s26, %s27
      %p31 = pneg %p25
      %p32 = scmp.eq.s32.totalorder %s16, 1
      %p33 = por %p31, %p32
      %p34 = scmp.ne.s32.totalorder %s26, %s29
      %p35 = scmp.eq.s32.totalorder %s16, 0
      %p36 = por %p34, %p35
      %p37 = scmp.ne.s32.totalorder %s26, %s29
      %p38 = scmp.eq.s32.totalorder %s21, 1
      %p39 = por %p37, %p38
      %p40 = scmp.ne.s32.totalorder %s29, %s30
      %p41 = scmp.eq.s32.totalorder %s21, 0
      %p42 = por %p40, %p41
      %p43 = scmp.ne.s32.totalorder %s29, %s30
      %p44 = scmp.eq.s32.totalorder %s22, 1
      %p45 = por %p43, %p44
      %p47 = scmp.ne.s32.totalorder %s30, %s46
      %p48 = scmp.eq.s32.totalorder %s22, 0
      %p49 = por %p47, %p48
      %s51 = sadd.s32 %s50, 1
      %p54 = scmp.eq.s32.totalorder %s16, 1
      %p55 = scmp.ne.s32.totalorder %s50, %s52
      %p56 = scmp.eq.s32.totalorder %s16, 0
      %p57 = por %p55, %p56
      %p58 = scmp.ne.s32.totalorder %s50, %s52
      %p59 = scmp.eq.s32.totalorder %s21, 1
      %p60 = por %p58, %p59
      %p61 = scmp.ne.s32.totalorder %s52, %s53
      %p62 = scmp.eq.s32.totalorder %s21, 0
      %p63 = por %p61, %p62
      %p64 = scmp.ne.s32.totalorder %s52, %s53
      %p65 = scmp.eq.s32.totalorder %s22, 1
      %p66 = por %p64, %p65
      %p68 = scmp.ne.s32.totalorder %s53, %s67
      %p69 = scmp.eq.s32.totalorder %s22, 0
      %p70 = por %p68, %p69
      %s72 = sadd.s32 %s71, 1
      %p75 = scmp.eq.s32.totalorder %s16, 1
      %p76 = scmp.ne.s32.totalorder %s71, %s73
      %p77 = scmp.eq.s32.totalorder %s16, 0
      %p78 = por %p76, %p77
      %p79 = scmp.ne.s32.totalorder %s71, %s73
      %p80 = scmp.eq.s32.totalorder %s21, 1
      %p81 = por %p79, %p80
      %p82 = scmp.ne.s32.totalorder %s73, %s74
      %p83 = scmp.eq.s32.totalorder %s21, 0
      %p84 = por %p82, %p83
      %p85 = scmp.ne.s32.totalorder %s73, %s74
      %p86 = scmp.eq.s32.totalorder %s22, 1
      %p87 = por %p85, %p86
      %p89 = scmp.ne.s32.totalorder %s74, %s88
      %p90 = scmp.eq.s32.totalorder %s22, 0
      %p91 = por %p89, %p90
      %s93 = sadd.s32 %s92, 1
      %p96 = scmp.eq.s32.totalorder %s16, 1
      %p97 = scmp.ne.s32.totalorder %s92, %s94
      %p98 = scmp.eq.s32.totalorder %s16, 0
      %p99 = por %p97, %p98
      %p100 = scmp.ne.s32.totalorder %s92, %s94
      %p101 = scmp.eq.s32.totalorder %s21, 1
      %p102 = por %p100, %p101
      %p103 = scmp.ne.s32.totalorder %s94, %s95
      %p104 = scmp.eq.s32.totalorder %s21, 0
      %p105 = por %p103, %p104
      %p106 = scmp.ne.s32.totalorder %s94, %s95
      %p107 = scmp.eq.s32.totalorder %s22, 1
      %p108 = por %p106, %p107
      %p110 = scmp.ne.s32.totalorder %s95, %s109
      %p111 = scmp.eq.s32.totalorder %s22, 0
      %p112 = por %p110, %p111
      %s114 = sadd.s32 %s113, 1
      %p117 = scmp.eq.s32.totalorder %s16, 1
      %p118 = scmp.ne.s32.totalorder %s113, %s115
      %p119 = scmp.eq.s32.totalorder %s16, 0
      %p120 = por %p118, %p119
      %p121 = scmp.ne.s32.totalorder %s113, %s115
      %p122 = scmp.eq.s32.totalorder %s21, 1
      %p123 = por %p121, %p122
      %p124 = scmp.ne.s32.totalorder %s115, %s116
      %p125 = scmp.eq.s32.totalorder %s21, 0
      %p126 = por %p124, %p125
      %p127 = scmp.ne.s32.totalorder %s115, %s116
      %p128 = scmp.eq.s32.totalorder %s22, 1
      %p129 = por %p127, %p128
      %p131 = scmp.ne.s32.totalorder %s116, %s130
      %p132 = scmp.eq.s32.totalorder %s22, 0
      %p133 = por %p131, %p132
      %s135 = sadd.s32 %s134, 1
      %p138 = scmp.eq.s32.totalorder %s16, 1
      %p139 = scmp.ne.s32.totalorder %s134, %s136
      %p140 = scmp.eq.s32.totalorder %s16, 0
      %p141 = por %p139, %p140
      %p142 = scmp.ne.s32.totalorder %s134, %s136
      %p143 = scmp.eq.s32.totalorder %s21, 1
      %p144 = por %p142, %p143
      %p145 = scmp.ne.s32.totalorder %s136, %s137
      %p146 = scmp.eq.s32.totalorder %s21, 0
      %p147 = por %p145, %p146
      %p148 = scmp.ne.s32.totalorder %s136, %s137
      %p149 = scmp.eq.s32.totalorder %s22, 1
      %p150 = por %p148, %p149
      %p152 = scmp.ne.s32.totalorder %s137, %s151
      %p153 = scmp.eq.s32.totalorder %s22, 0
      %p154 = por %p152, %p153
      %s156 = sadd.s32 %s155, 1
      %p159 = scmp.eq.s32.totalorder %s16, 1
      %p160 = scmp.ne.s32.totalorder %s155, %s157
      %p161 = scmp.eq.s32.totalorder %s16, 0
      %p162 = por %p160, %p161
      %p163 = scmp.ne.s32.totalorder %s155, %s157
      %p164 = scmp.eq.s32.totalorder %s21, 1
      %p165 = por %p163, %p164
      %p166 = scmp.ne.s32.totalorder %s157, %s158
      %p167 = scmp.eq.s32.totalorder %s21, 0
      %p168 = por %p166, %p167
      %p169 = scmp.ne.s32.totalorder %s157, %s158
      %p170 = scmp.eq.s32.totalorder %s22, 1
      %p171 = por %p169, %p170
      %p173 = scmp.ne.s32.totalorder %s158, %s172
      %p174 = scmp.eq.s32.totalorder %s22, 0
      %p175 = por %p173, %p174
      %s176 = ssub.s32 %s16, %s23
      %p177 = scmp.eq.s32.totalorder %s176, 0
      %s179 = sadd.s32 %s178, 1
      %s180 = scalar_select %p177, %s178, %s179
      %p183 = pneg %p177
      %p184 = scmp.eq.s32.totalorder %s16, 1
      %p185 = por %p183, %p184
      %p186 = scmp.ne.s32.totalorder %s178, %s181
      %p187 = scmp.eq.s32.totalorder %s16, 0
      %p188 = por %p186, %p187
      %p189 = scmp.ne.s32.totalorder %s178, %s181
      %p190 = scmp.eq.s32.totalorder %s21, 1
      %p191 = por %p189, %p190
      %p192 = scmp.ne.s32.totalorder %s181, %s182
      %p193 = scmp.eq.s32.totalorder %s21, 0
      %p194 = por %p192, %p193
      %p195 = scmp.ne.s32.totalorder %s181, %s182
      %p196 = scmp.eq.s32.totalorder %s22, 1
      %p197 = por %p195, %p196
      %p199 = scmp.ne.s32.totalorder %s182, %s198
      %p200 = scmp.eq.s32.totalorder %s22, 0
      %p201 = por %p199, %p200
      %p202 = scmp.le.s32.totalorder 1, %s16
      %p203 = scmp.lt.s32.totalorder %s16, 3
      %p204 = pnand %p202, %p203
      %p205 = pneg %p204
      // Predicated region
      $region9: #{tpu_custom_call.1} parent=5 // pred_check
        _
      $region10: #{tpu_custom_call.1} parent=5 // pred_check_branch
        %207 = sbr.rel (%p204) target = $region12
      $region11: #{tpu_custom_call.1} parent=5 // pred_region
        %s208 = ssub.s32 %s16, 1
        // Predicated region
        $region13: #{tpu_custom_call.1} parent=11 // pred_check
          %p209 = pneg %p63
        $region14: #{tpu_custom_call.1} parent=11 // pred_check_branch
          %211 = sbr.rel (%p209) target = $region16
        $region15: #{tpu_custom_call.1} parent=11 // pred_region
          _
        $region16: #{tpu_custom_call.1} parent=11 // pred_fallthru
          _
        // Predicated region
        $region17: #{tpu_custom_call.1} parent=11 // pred_check
          %p212 = pneg %p84
        $region18: #{tpu_custom_call.1} parent=11 // pred_check_branch
          %214 = sbr.rel (%p212) target = $region20
        $region19: #{tpu_custom_call.1} parent=11 // pred_region
          _
        $region20: #{tpu_custom_call.1} parent=11 // pred_fallthru
          _
        // Predicated region
        $region21: #{tpu_custom_call.1} parent=11 // pred_check
          %p215 = pneg %p105
        $region22: #{tpu_custom_call.1} parent=11 // pred_check_branch
          %217 = sbr.rel (%p215) target = $region24
        $region23: #{tpu_custom_call.1} parent=11 // pred_region
          _
        $region24: #{tpu_custom_call.1} parent=11 // pred_fallthru
          _
        // Predicated region
        $region25: #{tpu_custom_call.1} parent=11 // pred_check
          %p218 = pneg %p126
        $region26: #{tpu_custom_call.1} parent=11 // pred_check_branch
          %220 = sbr.rel (%p218) target = $region28
        $region27: #{tpu_custom_call.1} parent=11 // pred_region
          _
        $region28: #{tpu_custom_call.1} parent=11 // pred_fallthru
          _
        // Predicated region
        $region29: #{tpu_custom_call.1} parent=11 // pred_check
          %p221 = pneg %p147
        $region30: #{tpu_custom_call.1} parent=11 // pred_check_branch
          %223 = sbr.rel (%p221) target = $region32
        $region31: #{tpu_custom_call.1} parent=11 // pred_region
          _
        $region32: #{tpu_custom_call.1} parent=11 // pred_fallthru
          _
        // Predicated region
        $region33: #{tpu_custom_call.1} parent=11 // pred_check
          %p224 = pneg %p168
        $region34: #{tpu_custom_call.1} parent=11 // pred_check_branch
          %226 = sbr.rel (%p224) target = $region36
        $region35: #{tpu_custom_call.1} parent=11 // pred_region
          _
        $region36: #{tpu_custom_call.1} parent=11 // pred_fallthru
          _
      $region12: #{tpu_custom_call.1} parent=5 // pred_fallthru
        _
      %p227 = scmp.lt.s32.totalorder %s16, 2
      // Predicated region
      $region37: #{tpu_custom_call.1} parent=5 // pred_check
        %p228 = pneg %p227
      $region38: #{tpu_custom_call.1} parent=5 // pred_check_branch
        %230 = sbr.rel (%p228) target = $region40
      $region39: #{tpu_custom_call.1} parent=5 // pred_region
        // Predicated region
        $region41: #{tpu_custom_call.1} parent=39 // pred_check
          %p231 = pneg %p36
        $region42: #{tpu_custom_call.1} parent=39 // pred_check_branch
          %233 = sbr.rel (%p231) target = $region44
        $region43: #{tpu_custom_call.1} parent=39 // pred_region
          %s234 = smul.u32 16, %s16
          %p235 = scmp.lt.s32.totalorder %s234, 31
          %s236 = scalar_select %p235, %s234, 31
          %s237 = smul.addr %s236, 4
          %s238 = scalar_lea.vmem %s0, %s237
          %s239 = smul.u32 16, %s16
        $region44: #{tpu_custom_call.1} parent=39 // pred_fallthru
          _
      $region40: #{tpu_custom_call.1} parent=5 // pred_fallthru
        _
      %p240 = scmp.le.s32.totalorder 1, %s16
      %p241 = scmp.lt.s32.totalorder %s16, 3
      %p242 = pnand %p240, %p241
      %p243 = pneg %p242
      // Predicated region
      $region45: #{tpu_custom_call.1} parent=5 // pred_check
        _
      $region46: #{tpu_custom_call.1} parent=5 // pred_check_branch
        %245 = sbr.rel (%p242) target = $region48
      $region47: #{tpu_custom_call.1} parent=5 // pred_region
        %s246 = ssub.s32 %s16, 1
        %s247 = smul.u32 16, %s21
        %p248 = scmp.lt.s32.totalorder %s247, 31
        %s249 = scalar_select %p248, %s247, 31
        %s250 = smul.addr %s249, 4
        %s251 = scalar_lea.vmem %s0, %s250
        %p252 = pneg %p42
        %p253 = pneg %p39
        %p254 = pneg %p63
        %p255 = pneg %p60
        %p256 = pneg %p84
        %p257 = pneg %p81
        %p258 = pneg %p105
        %p259 = pneg %p102
        %p260 = pneg %p126
        %p261 = pneg %p123
        %p262 = pneg %p147
        %p263 = pneg %p144
        %p264 = pneg %p168
        %p265 = pneg %p165
        %p266 = pneg %p194
        %p267 = pneg %p191
        %s268 = sand.u32 %s181, 1
        %s269 = scalar_lea.sflag [#allocation3], %s268
        %s270 = sand.u32 %s181, 1
        %s271 = smul.addr %s270, 128
        %s272 = scalar_lea.vmem [#allocation2], %s271
        %s273 = smul.u32 16, %s21
        %p274 = scmp.lt.s32.totalorder %s273, 31
        %s275 = scalar_select %p274, %s273, 31
        %s276 = smul.addr %s275, 4
        %s277 = scalar_lea.vmem %s0, %s276
        %s278 = smul.u32 16, %s21
        %s279 = smul.u32 16, %s21
        %v281 = vld [vmem:[%s277] sm:$0xf]
        %v282 = vld [vmem:[%s277 + $0x4] sm:$0xf]
        %v283 = vld [vmem:[%s277 + $0x8] sm:$0xf]
        %v284 = vld [vmem:[%s277 + $0xc] sm:$0xf]
        %v285 = vld [vmem:[%s277 + $0x10] sm:$0xf]
        %v286 = vld [vmem:[%s277 + $0x14] sm:$0xf]
        %v287 = vld [vmem:[%s277 + $0x18] sm:$0xf]
        %v288 = vld [vmem:[%s277 + $0x1c] sm:$0xf]
        %v289 = vld [vmem:[%s277 + $0x20] sm:$0xf]
        %v290 = vld [vmem:[%s277 + $0x24] sm:$0xf]
        %v291 = vld [vmem:[%s277 + $0x28] sm:$0xf]
        %v292 = vld [vmem:[%s277 + $0x2c] sm:$0xf]
        %v293 = vld [vmem:[%s277 + $0x30] sm:$0xf]
        %v294 = vld [vmem:[%s277 + $0x34] sm:$0xf]
        %v295 = vld [vmem:[%s277 + $0x38] sm:$0xf]
        %v296 = vld [vmem:[%s277 + $0x3c] sm:$0xf]
        %v297 = vld [vmem:[%s1] sm:$0xf]
        %v298 = vld [vmem:[%s1 + $0x4] sm:$0xf]
        %v299 = vld [vmem:[%s1 + $0x8] sm:$0xf]
        %v300 = vld [vmem:[%s1 + $0xc] sm:$0xf]
        %v301 = vld [vmem:[%s2] sm:$0x1]
        %v303 = vlaneseq
        %v304 = vshrl.u32 %v303, 7
        %v305 = vsub.s32 0, %v304
        %v306 = vrot.slane %v301, %v305
        %v324 = vunpack.c.l.b16 %v281
        %v325 = vunpack.c.l.b16 %v282
        %v326 = vunpack.c.l.b16 %v283
        %v327 = vunpack.c.l.b16 %v284
        %v328 = vunpack.c.l.b16 %v285
        %v329 = vunpack.c.l.b16 %v286
        %v330 = vunpack.c.l.b16 %v287
        %v331 = vunpack.c.l.b16 %v288
        %v332 = vunpack.c.l.b16 %v289
        %v333 = vunpack.c.l.b16 %v290
        %v334 = vunpack.c.l.b16 %v291
        %v335 = vunpack.c.l.b16 %v292
        %v336 = vunpack.c.l.b16 %v293
        %v337 = vunpack.c.l.b16 %v294
        %v338 = vunpack.c.l.b16 %v295
        %v339 = vunpack.c.l.b16 %v296
        %v340 = vpack.c.b16 %v325, %v324
        %v341 = vpack.c.b16 %v327, %v326
        %v342 = vpack.c.b16 %v329, %v328
        %v343 = vpack.c.b16 %v331, %v330
        %v344 = vpack.c.b16 %v333, %v332
        %v345 = vpack.c.b16 %v335, %v334
        %v346 = vpack.c.b16 %v337, %v336
        %v347 = vpack.c.b16 %v339, %v338
        %v352 = vunpack.c.l.b16 %v297
        %v353 = vunpack.c.l.b16 %v298
        %v354 = vunpack.c.l.b16 %v299
        %v355 = vunpack.c.l.b16 %v300
        %v356 = vpack.c.b16 %v353, %v352
        %v357 = vpack.c.b16 %v355, %v354
        %vm360 = vcmask 261120
        %v362 = vsel %vm360, %v340, 0
        %v365 = vsel %vm360, %v341, 0
        %v368 = vsel %vm360, %v342, 0
        %v371 = vsel %vm360, %v343, 0
        %v374 = vsel %vm360, %v344, 0
        %v377 = vsel %vm360, %v345, 0
        %v380 = vsel %vm360, %v346, 0
        %v383 = vsel %vm360, %v347, 0
        %385 = vmatprep.subr.bf16.mxu0 0
        %386 = vmatpush1.bf16.msra.mxu0 0
        %387 = vmatprep.subr.bf16.mxu0 0
        %388 = vmatpush1.bf16.msra.mxu0 0
        %389 = vmatprep.subr.bf16.mxu0 0
        %390 = vmatpush1.bf16.msra.mxu0 0
        %391 = vmatprep.subr.bf16.mxu0 0
        %392 = vmatpush1.bf16.msra.mxu0 0
        %393 = vmatprep.subr.bf16.mxu0 0
        %394 = vmatpush1.bf16.msra.mxu0 0
        %395 = vmatprep.subr.bf16.mxu0 0
        %396 = vmatpush1.bf16.msra.mxu0 0
        %397 = vmatprep.subr.bf16.mxu0 0
        %398 = vmatpush1.bf16.msra.mxu0 %v357
        %399 = vmatprep.subr.bf16.mxu0 0
        %400 = vmatpush1.bf16.msra.mxu0 %v356
        %401 = vmatprep.subr.bf16.mxu0 0
        %402 = vmatpush2.bf16.msra.mxu0 0
        %403 = vmatprep.subr.bf16.mxu0 0
        %404 = vmatpush2.bf16.msra.mxu0 0
        %405 = vmatprep.subr.bf16.mxu0 0
        %406 = vmatpush2.bf16.msra.mxu0 0
        %407 = vmatprep.subr.bf16.mxu0 0
        %408 = vmatpush2.bf16.msra.mxu0 0
        %409 = vmatprep.subr.bf16.mxu0 0
        %410 = vmatpush2.bf16.msra.mxu0 0
        %411 = vmatprep.subr.bf16.mxu0 0
        %412 = vmatpush2.bf16.msra.mxu0 0
        %413 = vmatprep.subr.bf16.mxu0 0
        %414 = vmatpush2.bf16.msra.mxu0 0
        %415 = vmatprep.subr.bf16.mxu0 0
        %416 = vmatpush2.bf16.msra.mxu0 0
        %417 = vmatprep.mubr.bf16.mxu0 0
        %418 = vmatmul.mubr.bf16.gmra.mxu0 %v362
        %v419 = vpop.f32.mrf.mxu0
        %v420 = vadd.f32 %v306, %v419
        %v421 = vpop.f32.mrf.mxu0
        %v422 = vpop.f32.mrf.mxu0
        %v423 = vadd.f32 %v306, %v422
        %v424 = vpop.f32.mrf.mxu0
        %425 = vmatprep.mubr.bf16.mxu0 0
        %426 = vmatmul.mubr.bf16.gmra.mxu0 %v365
        %v427 = vpop.f32.mrf.mxu0
        %v428 = vadd.f32 %v306, %v427
        %v429 = vpop.f32.mrf.mxu0
        %v430 = vpop.f32.mrf.mxu0
        %v431 = vadd.f32 %v306, %v430
        %v432 = vpop.f32.mrf.mxu0
        %433 = vmatprep.mubr.bf16.mxu0 0
        %434 = vmatmul.mubr.bf16.gmra.mxu0 %v368
        %v435 = vpop.f32.mrf.mxu0
        %v436 = vadd.f32 %v306, %v435
        %v437 = vpop.f32.mrf.mxu0
        %v438 = vpop.f32.mrf.mxu0
        %v439 = vadd.f32 %v306, %v438
        %v440 = vpop.f32.mrf.mxu0
        %441 = vmatprep.mubr.bf16.mxu0 0
        %442 = vmatmul.mubr.bf16.gmra.mxu0 %v371
        %v443 = vpop.f32.mrf.mxu0
        %v444 = vadd.f32 %v306, %v443
        %v445 = vpop.f32.mrf.mxu0
        %v446 = vpop.f32.mrf.mxu0
        %v447 = vadd.f32 %v306, %v446
        %v448 = vpop.f32.mrf.mxu0
        %449 = vmatprep.mubr.bf16.mxu0 0
        %450 = vmatmul.mubr.bf16.gmra.mxu0 %v374
        %v451 = vpop.f32.mrf.mxu0
        %v452 = vadd.f32 %v306, %v451
        %v453 = vpop.f32.mrf.mxu0
        %v454 = vpop.f32.mrf.mxu0
        %v455 = vadd.f32 %v306, %v454
        %v456 = vpop.f32.mrf.mxu0
        %457 = vmatprep.mubr.bf16.mxu0 0
        %458 = vmatmul.mubr.bf16.gmra.mxu0 %v377
        %v459 = vpop.f32.mrf.mxu0
        %v460 = vadd.f32 %v306, %v459
        %v461 = vpop.f32.mrf.mxu0
        %v462 = vpop.f32.mrf.mxu0
        %v463 = vadd.f32 %v306, %v462
        %v464 = vpop.f32.mrf.mxu0
        %465 = vmatprep.mubr.bf16.mxu0 0
        %466 = vmatmul.mubr.bf16.gmra.mxu0 %v380
        %v467 = vpop.f32.mrf.mxu0
        %v468 = vadd.f32 %v306, %v467
        %v469 = vpop.f32.mrf.mxu0
        %v470 = vpop.f32.mrf.mxu0
        %v471 = vadd.f32 %v306, %v470
        %v472 = vpop.f32.mrf.mxu0
        %473 = vmatprep.mubr.bf16.mxu0 0
        %474 = vmatmul.mubr.bf16.gmra.mxu0 %v383
        %v475 = vpop.f32.mrf.mxu0
        %v476 = vadd.f32 %v306, %v475
        %v477 = vpop.f32.mrf.mxu0
        %v478 = vpop.f32.mrf.mxu0
        %v479 = vadd.f32 %v306, %v478
        %v480 = vpop.f32.mrf.mxu0
        %481 = vdwg.mxu0
        %v482 = vmax.f32 %v420, 0.0
        %v483 = vmax.f32 %v423, 0.0
        %v484 = vmax.f32 %v428, 0.0
        %v485 = vmax.f32 %v431, 0.0
        %v486 = vmax.f32 %v436, 0.0
        %v487 = vmax.f32 %v439, 0.0
        %v488 = vmax.f32 %v444, 0.0
        %v489 = vmax.f32 %v447, 0.0
        %v490 = vmax.f32 %v452, 0.0
        %v491 = vmax.f32 %v455, 0.0
        %v492 = vmax.f32 %v460, 0.0
        %v493 = vmax.f32 %v463, 0.0
        %v494 = vmax.f32 %v468, 0.0
        %v495 = vmax.f32 %v471, 0.0
        %v496 = vmax.f32 %v476, 0.0
        %v497 = vmax.f32 %v479, 0.0
        %v498 = vpack.c.bf16 %v483, %v482
        %v499 = vpack.c.bf16 %v485, %v484
        %v500 = vpack.c.bf16 %v487, %v486
        %v501 = vpack.c.bf16 %v489, %v488
        %v502 = vpack.c.bf16 %v491, %v490
        %v503 = vpack.c.bf16 %v493, %v492
        %v504 = vpack.c.bf16 %v495, %v494
        %v505 = vpack.c.bf16 %v497, %v496
        %v506 = vld [vmem:[%s3] sm:$0xf]
        %v507 = vld [vmem:[%s3 + $0x4] sm:$0xf]
        %v508 = vld [vmem:[%s3 + $0x8] sm:$0xf]
        %v509 = vld [vmem:[%s3 + $0xc] sm:$0xf]
        %v510 = vld [vmem:[%s4] sm:$0x1]
        %v512 = vlaneseq
        %v513 = vshrl.u32 %v512, 7
        %v514 = vsub.s32 0, %v513
        %v515 = vrot.slane %v510, %v514
        %v521 = vunpack.c.l.b16 %v506
        %v522 = vunpack.c.l.b16 %v507
        %v523 = vunpack.c.l.b16 %v508
        %v524 = vunpack.c.l.b16 %v509
        %v525 = vpack.c.b16 %v522, %v521
        %v526 = vpack.c.b16 %v524, %v523
        %v530 = vsel %vm360, %v498, 0
        %v533 = vsel %vm360, %v499, 0
        %v536 = vsel %vm360, %v500, 0
        %v539 = vsel %vm360, %v501, 0
        %v542 = vsel %vm360, %v502, 0
        %v545 = vsel %vm360, %v503, 0
        %v548 = vsel %vm360, %v504, 0
        %v551 = vsel %vm360, %v505, 0
        %553 = vmatprep.subr.bf16.mxu0 0
        %554 = vmatpush1.bf16.msra.mxu0 0
        %555 = vmatprep.subr.bf16.mxu0 0
        %556 = vmatpush1.bf16.msra.mxu0 0
        %557 = vmatprep.subr.bf16.mxu0 0
        %558 = vmatpush1.bf16.msra.mxu0 0
        %559 = vmatprep.subr.bf16.mxu0 0
        %560 = vmatpush1.bf16.msra.mxu0 0
        %561 = vmatprep.subr.bf16.mxu0 0
        %562 = vmatpush1.bf16.msra.mxu0 0
        %563 = vmatprep.subr.bf16.mxu0 0
        %564 = vmatpush1.bf16.msra.mxu0 0
        %565 = vmatprep.subr.bf16.mxu0 0
        %566 = vmatpush1.bf16.msra.mxu0 %v526
        %567 = vmatprep.subr.bf16.mxu0 0
        %568 = vmatpush1.bf16.msra.mxu0 %v525
        %569 = vmatprep.subr.bf16.mxu0 0
        %570 = vmatpush2.bf16.msra.mxu0 0
        %571 = vmatprep.subr.bf16.mxu0 0
        %572 = vmatpush2.bf16.msra.mxu0 0
        %573 = vmatprep.subr.bf16.mxu0 0
        %574 = vmatpush2.bf16.msra.mxu0 0
        %575 = vmatprep.subr.bf16.mxu0 0
        %576 = vmatpush2.bf16.msra.mxu0 0
        %577 = vmatprep.subr.bf16.mxu0 0
        %578 = vmatpush2.bf16.msra.mxu0 0
        %579 = vmatprep.subr.bf16.mxu0 0
        %580 = vmatpush2.bf16.msra.mxu0 0
        %581 = vmatprep.subr.bf16.mxu0 0
        %582 = vmatpush2.bf16.msra.mxu0 0
        %583 = vmatprep.subr.bf16.mxu0 0
        %584 = vmatpush2.bf16.msra.mxu0 0
        %585 = vmatprep.mubr.bf16.mxu0 0
        %586 = vmatmul.mubr.bf16.gmra.mxu0 %v530
        %v587 = vpop.f32.mrf.mxu0
        %v588 = vadd.f32 %v515, %v587
        %v589 = vpop.f32.mrf.mxu0
        %v590 = vpop.f32.mrf.mxu0
        %v591 = vadd.f32 %v515, %v590
        %v592 = vpop.f32.mrf.mxu0
        %593 = vmatprep.mubr.bf16.mxu0 0
        %594 = vmatmul.mubr.bf16.gmra.mxu0 %v533
        %v595 = vpop.f32.mrf.mxu0
        %v596 = vadd.f32 %v515, %v595
        %v597 = vpop.f32.mrf.mxu0
        %v598 = vpop.f32.mrf.mxu0
        %v599 = vadd.f32 %v515, %v598
        %v600 = vpop.f32.mrf.mxu0
        %601 = vmatprep.mubr.bf16.mxu0 0
        %602 = vmatmul.mubr.bf16.gmra.mxu0 %v536
        %v603 = vpop.f32.mrf.mxu0
        %v604 = vadd.f32 %v515, %v603
        %v605 = vpop.f32.mrf.mxu0
        %v606 = vpop.f32.mrf.mxu0
        %v607 = vadd.f32 %v515, %v606
        %v608 = vpop.f32.mrf.mxu0
        %609 = vmatprep.mubr.bf16.mxu0 0
        %610 = vmatmul.mubr.bf16.gmra.mxu0 %v539
        %v611 = vpop.f32.mrf.mxu0
        %v612 = vadd.f32 %v515, %v611
        %v613 = vpop.f32.mrf.mxu0
        %v614 = vpop.f32.mrf.mxu0
        %v615 = vadd.f32 %v515, %v614
        %v616 = vpop.f32.mrf.mxu0
        %617 = vmatprep.mubr.bf16.mxu0 0
        %618 = vmatmul.mubr.bf16.gmra.mxu0 %v542
        %v619 = vpop.f32.mrf.mxu0
        %v620 = vadd.f32 %v515, %v619
        %v621 = vpop.f32.mrf.mxu0
        %v622 = vpop.f32.mrf.mxu0
        %v623 = vadd.f32 %v515, %v622
        %v624 = vpop.f32.mrf.mxu0
        %625 = vmatprep.mubr.bf16.mxu0 0
        %626 = vmatmul.mubr.bf16.gmra.mxu0 %v545
        %v627 = vpop.f32.mrf.mxu0
        %v628 = vadd.f32 %v515, %v627
        %v629 = vpop.f32.mrf.mxu0
        %v630 = vpop.f32.mrf.mxu0
        %v631 = vadd.f32 %v515, %v630
        %v632 = vpop.f32.mrf.mxu0
        %633 = vmatprep.mubr.bf16.mxu0 0
        %634 = vmatmul.mubr.bf16.gmra.mxu0 %v548
        %v635 = vpop.f32.mrf.mxu0
        %v636 = vadd.f32 %v515, %v635
        %v637 = vpop.f32.mrf.mxu0
        %v638 = vpop.f32.mrf.mxu0
        %v639 = vadd.f32 %v515, %v638
        %v640 = vpop.f32.mrf.mxu0
        %641 = vmatprep.mubr.bf16.mxu0 0
        %642 = vmatmul.mubr.bf16.gmra.mxu0 %v551
        %v643 = vpop.f32.mrf.mxu0
        %v644 = vadd.f32 %v515, %v643
        %v645 = vpop.f32.mrf.mxu0
        %v646 = vpop.f32.mrf.mxu0
        %v647 = vadd.f32 %v515, %v646
        %v648 = vpop.f32.mrf.mxu0
        %649 = vdwg.mxu0
        %v650 = vmax.f32 %v588, 0.0
        %v651 = vmax.f32 %v591, 0.0
        %v652 = vmax.f32 %v596, 0.0
        %v653 = vmax.f32 %v599, 0.0
        %v654 = vmax.f32 %v604, 0.0
        %v655 = vmax.f32 %v607, 0.0
        %v656 = vmax.f32 %v612, 0.0
        %v657 = vmax.f32 %v615, 0.0
        %v658 = vmax.f32 %v620, 0.0
        %v659 = vmax.f32 %v623, 0.0
        %v660 = vmax.f32 %v628, 0.0
        %v661 = vmax.f32 %v631, 0.0
        %v662 = vmax.f32 %v636, 0.0
        %v663 = vmax.f32 %v639, 0.0
        %v664 = vmax.f32 %v644, 0.0
        %v665 = vmax.f32 %v647, 0.0
        %v666 = vpack.c.bf16 %v651, %v650
        %v667 = vpack.c.bf16 %v653, %v652
        %v668 = vpack.c.bf16 %v655, %v654
        %v669 = vpack.c.bf16 %v657, %v656
        %v670 = vpack.c.bf16 %v659, %v658
        %v671 = vpack.c.bf16 %v661, %v660
        %v672 = vpack.c.bf16 %v663, %v662
        %v673 = vpack.c.bf16 %v665, %v664
        %v674 = vld [vmem:[%s5] sm:$0xf]
        %v675 = vld [vmem:[%s5 + $0x4] sm:$0xf]
        %v676 = vld [vmem:[%s5 + $0x8] sm:$0xf]
        %v677 = vld [vmem:[%s5 + $0xc] sm:$0xf]
        %v678 = vld [vmem:[%s6] sm:$0x1]
        %v680 = vlaneseq
        %v681 = vshrl.u32 %v680, 7
        %v682 = vsub.s32 0, %v681
        %v683 = vrot.slane %v678, %v682
        %v689 = vunpack.c.l.b16 %v674
        %v690 = vunpack.c.l.b16 %v675
        %v691 = vunpack.c.l.b16 %v676
        %v692 = vunpack.c.l.b16 %v677
        %v693 = vpack.c.b16 %v690, %v689
        %v694 = vpack.c.b16 %v692, %v691
        %v698 = vsel %vm360, %v666, 0
        %v701 = vsel %vm360, %v667, 0
        %v704 = vsel %vm360, %v668, 0
        %v707 = vsel %vm360, %v669, 0
        %v710 = vsel %vm360, %v670, 0
        %v713 = vsel %vm360, %v671, 0
        %v716 = vsel %vm360, %v672, 0
        %v719 = vsel %vm360, %v673, 0
        %721 = vmatprep.subr.bf16.mxu0 0
        %722 = vmatpush1.bf16.msra.mxu0 0
        %723 = vmatprep.subr.bf16.mxu0 0
        %724 = vmatpush1.bf16.msra.mxu0 0
        %725 = vmatprep.subr.bf16.mxu0 0
        %726 = vmatpush1.bf16.msra.mxu0 0
        %727 = vmatprep.subr.bf16.mxu0 0
        %728 = vmatpush1.bf16.msra.mxu0 0
        %729 = vmatprep.subr.bf16.mxu0 0
        %730 = vmatpush1.bf16.msra.mxu0 0
        %731 = vmatprep.subr.bf16.mxu0 0
        %732 = vmatpush1.bf16.msra.mxu0 0
        %733 = vmatprep.subr.bf16.mxu0 0
        %734 = vmatpush1.bf16.msra.mxu0 %v694
        %735 = vmatprep.subr.bf16.mxu0 0
        %736 = vmatpush1.bf16.msra.mxu0 %v693
        %737 = vmatprep.subr.bf16.mxu0 0
        %738 = vmatpush2.bf16.msra.mxu0 0
        %739 = vmatprep.subr.bf16.mxu0 0
        %740 = vmatpush2.bf16.msra.mxu0 0
        %741 = vmatprep.subr.bf16.mxu0 0
        %742 = vmatpush2.bf16.msra.mxu0 0
        %743 = vmatprep.subr.bf16.mxu0 0
        %744 = vmatpush2.bf16.msra.mxu0 0
        %745 = vmatprep.subr.bf16.mxu0 0
        %746 = vmatpush2.bf16.msra.mxu0 0
        %747 = vmatprep.subr.bf16.mxu0 0
        %748 = vmatpush2.bf16.msra.mxu0 0
        %749 = vmatprep.subr.bf16.mxu0 0
        %750 = vmatpush2.bf16.msra.mxu0 0
        %751 = vmatprep.subr.bf16.mxu0 0
        %752 = vmatpush2.bf16.msra.mxu0 0
        %753 = vmatprep.mubr.bf16.mxu0 0
        %754 = vmatmul.mubr.bf16.gmra.mxu0 %v698
        %v755 = vpop.f32.mrf.mxu0
        %v756 = vadd.f32 %v683, %v755
        %v757 = vpop.f32.mrf.mxu0
        %v758 = vpop.f32.mrf.mxu0
        %v759 = vadd.f32 %v683, %v758
        %v760 = vpop.f32.mrf.mxu0
        %761 = vmatprep.mubr.bf16.mxu0 0
        %762 = vmatmul.mubr.bf16.gmra.mxu0 %v701
        %v763 = vpop.f32.mrf.mxu0
        %v764 = vadd.f32 %v683, %v763
        %v765 = vpop.f32.mrf.mxu0
        %v766 = vpop.f32.mrf.mxu0
        %v767 = vadd.f32 %v683, %v766
        %v768 = vpop.f32.mrf.mxu0
        %769 = vmatprep.mubr.bf16.mxu0 0
        %770 = vmatmul.mubr.bf16.gmra.mxu0 %v704
        %v771 = vpop.f32.mrf.mxu0
        %v772 = vadd.f32 %v683, %v771
        %v773 = vpop.f32.mrf.mxu0
        %v774 = vpop.f32.mrf.mxu0
        %v775 = vadd.f32 %v683, %v774
        %v776 = vpop.f32.mrf.mxu0
        %777 = vmatprep.mubr.bf16.mxu0 0
        %778 = vmatmul.mubr.bf16.gmra.mxu0 %v707
        %v779 = vpop.f32.mrf.mxu0
        %v780 = vadd.f32 %v683, %v779
        %v781 = vpop.f32.mrf.mxu0
        %v782 = vpop.f32.mrf.mxu0
        %v783 = vadd.f32 %v683, %v782
        %v784 = vpop.f32.mrf.mxu0
        %785 = vmatprep.mubr.bf16.mxu0 0
        %786 = vmatmul.mubr.bf16.gmra.mxu0 %v710
        %v787 = vpop.f32.mrf.mxu0
        %v788 = vadd.f32 %v683, %v787
        %v789 = vpop.f32.mrf.mxu0
        %v790 = vpop.f32.mrf.mxu0
        %v791 = vadd.f32 %v683, %v790
        %v792 = vpop.f32.mrf.mxu0
        %793 = vmatprep.mubr.bf16.mxu0 0
        %794 = vmatmul.mubr.bf16.gmra.mxu0 %v713
        %v795 = vpop.f32.mrf.mxu0
        %v796 = vadd.f32 %v683, %v795
        %v797 = vpop.f32.mrf.mxu0
        %v798 = vpop.f32.mrf.mxu0
        %v799 = vadd.f32 %v683, %v798
        %v800 = vpop.f32.mrf.mxu0
        %801 = vmatprep.mubr.bf16.mxu0 0
        %802 = vmatmul.mubr.bf16.gmra.mxu0 %v716
        %v803 = vpop.f32.mrf.mxu0
        %v804 = vadd.f32 %v683, %v803
        %v805 = vpop.f32.mrf.mxu0
        %v806 = vpop.f32.mrf.mxu0
        %v807 = vadd.f32 %v683, %v806
        %v808 = vpop.f32.mrf.mxu0
        %809 = vmatprep.mubr.bf16.mxu0 0
        %810 = vmatmul.mubr.bf16.gmra.mxu0 %v719
        %v811 = vpop.f32.mrf.mxu0
        %v812 = vadd.f32 %v683, %v811
        %v813 = vpop.f32.mrf.mxu0
        %v814 = vpop.f32.mrf.mxu0
        %v815 = vadd.f32 %v683, %v814
        %v816 = vpop.f32.mrf.mxu0
        %817 = vdwg.mxu0
        %818 = vst [vmem:[%s272] sm:$0xff] %v756
        %819 = vst [vmem:[%s272 + $0x8] sm:$0xff] %v759
        %820 = vst [vmem:[%s272 + $0x10] sm:$0xff] %v764
        %821 = vst [vmem:[%s272 + $0x18] sm:$0xff] %v767
        %822 = vst [vmem:[%s272 + $0x20] sm:$0xff] %v772
        %823 = vst [vmem:[%s272 + $0x28] sm:$0xff] %v775
        %824 = vst [vmem:[%s272 + $0x30] sm:$0xff] %v780
        %825 = vst [vmem:[%s272 + $0x38] sm:$0xff] %v783
        %826 = vst [vmem:[%s272 + $0x40] sm:$0xff] %v788
        %827 = vst [vmem:[%s272 + $0x48] sm:$0xff] %v791
        %828 = vst [vmem:[%s272 + $0x50] sm:$0xff] %v796
        %829 = vst [vmem:[%s272 + $0x58] sm:$0xff] %v799
        %830 = vst [vmem:[%s272 + $0x60] sm:$0xff] %v804
        %831 = vst [vmem:[%s272 + $0x68] sm:$0xff] %v807
        %832 = vst [vmem:[%s272 + $0x70] sm:$0xff] %v812
        %833 = vst [vmem:[%s272 + $0x78] sm:$0xff] %v815
        %s834 = sand.u32 %s181, 1
        %s835 = scalar_lea.sflag [#allocation3], %s834
        %s836 = sand.u32 %s181, 1
        %s837 = smul.addr %s836, 128
        %s838 = scalar_lea.vmem [#allocation2], %s837
        // Predicated region
        $region49: #{tpu_custom_call.1} parent=47 // pred_check
          %p839 = pneg %p191
        $region50: #{tpu_custom_call.1} parent=47 // pred_check_branch
          %841 = sbr.rel (%p839) target = $region52
        $region51: #{tpu_custom_call.1} parent=47 // pred_region
          %s842 = smul.u32 16, %s21
          %s844 = ssub.s32 2048, 2048
          %845 = vsyncadd %s835, %s844
          %s846 = smul.addr %s842, 128
          %s847 = scalar_lea.hbm %s7, %s846
          %s848 = sshll.u32 %s838, 4
          %s849 = int_to_ptr.vmem [resolvable:$true] %s848
          %854 = dma.vmem_to_hbm [thread:$0]  %s849, 2048, %s847, %s835, 128, 128, 8
        $region52: #{tpu_custom_call.1} parent=47 // pred_fallthru
          _
      $region48: #{tpu_custom_call.1} parent=5 // pred_fallthru
        _
      %p855 = scmp.le.s32.totalorder 2, %s16
      // Predicated region
      $region53: #{tpu_custom_call.1} parent=5 // pred_check
        %p856 = pneg %p855
      $region54: #{tpu_custom_call.1} parent=5 // pred_check_branch
        %858 = sbr.rel (%p856) target = $region56
      $region55: #{tpu_custom_call.1} parent=5 // pred_region
        %s859 = ssub.s32 %s16, 2
        // Predicated region
        $region57: #{tpu_custom_call.1} parent=55 // pred_check
          %p860 = pneg %p197
        $region58: #{tpu_custom_call.1} parent=55 // pred_check_branch
          %862 = sbr.rel (%p860) target = $region60
        $region59: #{tpu_custom_call.1} parent=55 // pred_region
          %s863 = sand.u32 %s182, 1
          %s864 = scalar_lea.sflag [#allocation3], %s863
          %s865 = sand.u32 %s182, 1
          %s866 = smul.addr %s865, 128
          %s867 = scalar_lea.vmem [#allocation2], %s866
          %868 = dma.done %s864, 2048
        $region60: #{tpu_custom_call.1} parent=55 // pred_fallthru
          _
      $region56: #{tpu_custom_call.1} parent=5 // pred_fallthru
        _
    $region6: #{tpu_custom_call.1} parent=1 // loop_footer
      %s20 = sadd.s32 1, %s16
    $region7: #{tpu_custom_call.1} parent=1 // loop_footer_branch
      %15 = sbr.rel target = $region3
    $region8: #{tpu_custom_call.1} parent=1 // loop_exit
      _
    %869 = vsyncpa [#allocation3], 1
    %s870 = scalar_lea.sflag [#allocation3], 1
    %871 = vsyncpa %s870, 1

</llo_original>
